<compile_context>
chip_gen: v7x
topology: tpu7x:2x2x1
jax: 0.10.0
libtpu: 0.0.40
codegen_flags: <defaults>
</compile_context>

<pallas_src>
import jax
import jax.numpy as jnp
from jax.experimental import pallas as pl
from jax.experimental.pallas import tpu as pltpu


# ---------------------------------------------------------------------------
# Kernel: one-hot gather of the pre-fused table (relu(E @ W^T + b)) rows.
# ---------------------------------------------------------------------------
def category_encoder_kernel(idx_ref, tbl_ref, o_ref):
    # idx_ref: [TP, P]        int32, pre-offset ids (id + p * Vp)
    # tbl_ref: [P*Vp, P*Dp]   block-diagonal fused table (relu(E @ W^T + b))
    # o_ref:   [TP,  P*Dp]    lane-dense output tile
    idx = idx_ref[...]
    tp, pack = idx.shape
    pvv = tbl_ref.shape[0]

    # Build the one-hot matrix: hot[r, idx[r, p]] = 1 for every packed slot p.
    # Offsets p*Vp were already applied in the wrapper, so this is pure compare.
    col = jax.lax.broadcasted_iota(jnp.int32, (tp, pvv), 1)
    hot = col == idx[:, 0:1]
    for p in range(1, pack):
        hot = jnp.logical_or(hot, col == idx[:, p:p + 1])

    # Single MXU matmul = the gather.  Everything else was folded offline.
    o_ref[...] = jnp.dot(
        hot.astype(tbl_ref.dtype), tbl_ref[...],
        preferred_element_type=jnp.float32,
    ).astype(o_ref.dtype)


# ---------------------------------------------------------------------------
# One-time packing (outside the per-call hot path).
# ---------------------------------------------------------------------------
def _round_up(x: int, m: int) -> int:
    return (x + m - 1) // m * m


def choose_packing(embedding_dim: int, target_lanes: int = 256):
    """Pick (pack, dp): pack rows per kernel row, per-block padded width dp.

    pack*dp is always a multiple of 128 (lane-dense unmasked stores); we aim
    for 256 output lanes to fill the 256-wide v6e/v7x MXU per pass.
    """
    pack = max(1, target_lanes // embedding_dim)
    dp = embedding_dim
    while (pack * dp) % 128 != 0:
        dp += 1                      # zero-pad per-block width (sliced off later)
    return pack, dp


def prepare_category_encoder_params(emb_table, w, b, *, pack, dp, vp):
    """Fold Linear + bias + ReLU into the table and pack it. Call once.

    emb_table: f32 [V, D]  nn.Embedding weight (V = n_categories + 1)
    w:         f32 [D, D]  nn.Linear weight (out_features, in_features)
    b:         f32 [D]     nn.Linear bias
    Returns the block-diagonal fused table [pack*vp, pack*dp].
    """
    v, d = emb_table.shape
    # Exact fold: bias + ReLU are row-wise/elementwise, so they commute with
    # the row gather.  Re-run this packing whenever the weights change.
    fused = jnp.maximum(emb_table @ w.T + b, 0.0)                 # [V, D]
    fused = jnp.pad(fused, ((0, vp - v), (0, dp - d)))            # [Vp, Dp]
    if pack > 1:
        # TODO(synk): block_diag grows as pack^2 * Vp * Dp; for large vocab
        # switch to a PrefetchScalarGridSpec / pl.Element row-gather instead.
        fused = jax.scipy.linalg.block_diag(*([fused] * pack))
    return fused


# ---------------------------------------------------------------------------
# Per-call forward pass.
# ---------------------------------------------------------------------------
def category_encoder(x_idx, tbl_p, *, d, pack, dp, vp,
                     tile_rows=1024, out_dtype=jnp.float32):
    """relu(Linear(Embedding(x_idx))) for int indices x_idx of shape [B]."""
    n = x_idx.shape[0]
    pvd = pack * dp
    pvv = pack * vp

    # Pad the flat batch so it reshapes into packed (lane-dense) rows.
    bp = _round_up(n, pack) // pack

    # Batch-aware tiling: small batches -> one big step; large batches ->
    # big tiles sharded across TensorCores.  Tiles are sublane (8) aligned.
    tile_rows = max(8, min(_round_up(tile_rows, 8), _round_up(bp, 8)))
    bp_pad = _round_up(bp, tile_rows)
    total = bp_pad * pack

    idx = jnp.pad(x_idx.astype(jnp.int32), (0, total - n))        # pad with id 0
    # Pre-offset the packed slots here (cheap one-time XLA add), not in-kernel.
    idx2 = idx.reshape(bp_pad, pack) + (
        jnp.arange(pack, dtype=jnp.int32)[None, :] * vp)

    grid = (bp_pad // tile_rows,)
    out_packed = pl.pallas_call(
        category_encoder_kernel,
        out_shape=jax.ShapeDtypeStruct((bp_pad, pvd), out_dtype),
        grid_spec=pl.GridSpec(
            grid=grid,
            in_specs=[
                pl.BlockSpec((tile_rows, pack), lambda i: (i, 0)),  # index tile
                pl.BlockSpec((pvv, pvd), lambda i: (0, 0)),         # resident table
            ],
            out_specs=pl.BlockSpec((tile_rows, pvd), lambda i: (i, 0)),
        ),
        compiler_params=pltpu.CompilerParams(
            dimension_semantics=("parallel",),   # batch axis shards across TCs
        ),
    )(idx2, tbl_p)

    # [bp_pad, pack*dp] -> [bp_pad*pack, dp] is a free row-major view;
    # slice off the batch/lane padding.
    return out_packed.reshape(bp_pad * pack, dp)[:n, :d]


# ---------------------------------------------------------------------------
# Demo / correctness check.
# ---------------------------------------------------------------------------
if __name__ == "__main__":
    n_categories = 10
    embedding_dim = 64
    batch = 256

    key = jax.random.PRNGKey(0)
    k_emb, k_w, k_b, k_idx = jax.random.split(key, 4)

    # nn.Embedding default init: N(0, 1); table has n_categories + 1 rows.
    emb_table = jax.random.normal(
        k_emb, (n_categories + 1, embedding_dim), dtype=jnp.float32)
    # nn.Linear default init: U(-1/sqrt(in), 1/sqrt(in)) for weight and bias.
    bound = 1.0 / jnp.sqrt(jnp.float32(embedding_dim))
    w = jax.random.uniform(k_w, (embedding_dim, embedding_dim),
                           minval=-bound, maxval=bound, dtype=jnp.float32)
    b = jax.random.uniform(k_b, (embedding_dim,),
                           minval=-bound, maxval=bound, dtype=jnp.float32)

    x_idx = jax.random.randint(k_idx, (batch,), minval=0,
                               maxval=n_categories + 1, dtype=jnp.int32)

    # One-time packing (outside the per-call hot path).
    pack, dp = choose_packing(embedding_dim)          # pack=4, dp=64 -> 256 lanes
    vp = _round_up(n_categories + 1, 8)               # sublane-aligned K
    tbl_p = prepare_category_encoder_params(emb_table, w, b,
                                            pack=pack, dp=dp, vp=vp)

    out = category_encoder(x_idx, tbl_p, d=embedding_dim,
                           pack=pack, dp=dp, vp=vp)
    out = jax.block_until_ready(out)

    # Pure-JAX reference: relu(E[x] @ W^T + b).
    ref = jnp.maximum(emb_table[x_idx] @ w.T + b, 0.0)
    assert out.shape == (batch, embedding_dim)
    assert jnp.allclose(out, ref, atol=1e-5, rtol=1e-5)

    print("KERNEL_OK")
</pallas_src>

<mosaic_0001>
module attributes {stable_mosaic.version = 11 : i64} {
  func.func @category_encoder_kernel(%arg0: i32, %arg1: memref<64x4xi32, #tpu.memory_space<vmem>>, %arg2: memref<64x256xf32, #tpu.memory_space<vmem>>, %arg3: memref<64x256xf32, #tpu.memory_space<vmem>>) attributes {dimension_semantics = [#tpu.dimension_semantics<parallel>], iteration_bounds = array<i64: 1>, scalar_prefetch = 0 : i64, scratch_operands = 0 : i64, tpu.core_type = #tpu.core_type<tc>, window_params = [{transform_indices = @transform_0, window_bounds = array<i64: 64, 4>}, {pipeline_mode = #tpu.pipeline_mode<synchronous>, transform_indices = @transform_1, window_bounds = array<i64: 64, 256>}, {transform_indices = @transform_2, window_bounds = array<i64: 64, 256>}]} {
    %c0 = arith.constant 0 : index
    %c0_0 = arith.constant 0 : index
    %0 = vector.load %arg1[%c0, %c0_0] : memref<64x4xi32, #tpu.memory_space<vmem>>, vector<64x4xi32>
    %1 = tpu.iota {dimensions = array<i32: 1>} : vector<64x64xi32>
    %2 = vector.extract_strided_slice %0 {offsets = [0, 0], sizes = [64, 1], strides = [1, 1]} : vector<64x4xi32> to vector<64x1xi32>
    %3 = vector.broadcast %2 : vector<64x1xi32> to vector<64x64xi32>
    %4 = arith.cmpi eq, %1, %3 : vector<64x64xi32>
    %5 = vector.extract_strided_slice %0 {offsets = [0, 1], sizes = [64, 1], strides = [1, 1]} : vector<64x4xi32> to vector<64x1xi32>
    %6 = vector.broadcast %5 : vector<64x1xi32> to vector<64x64xi32>
    %7 = arith.cmpi eq, %1, %6 : vector<64x64xi32>
    %8 = arith.ori %4, %7 : vector<64x64xi1>
    %9 = vector.extract_strided_slice %0 {offsets = [0, 2], sizes = [64, 1], strides = [1, 1]} : vector<64x4xi32> to vector<64x1xi32>
    %10 = vector.broadcast %9 : vector<64x1xi32> to vector<64x64xi32>
    %11 = arith.cmpi eq, %1, %10 : vector<64x64xi32>
    %12 = arith.ori %8, %11 : vector<64x64xi1>
    %13 = vector.extract_strided_slice %0 {offsets = [0, 3], sizes = [64, 1], strides = [1, 1]} : vector<64x4xi32> to vector<64x1xi32>
    %14 = vector.broadcast %13 : vector<64x1xi32> to vector<64x64xi32>
    %15 = arith.cmpi eq, %1, %14 : vector<64x64xi32>
    %16 = arith.ori %12, %15 : vector<64x64xi1>
    %17 = arith.extui %16 : vector<64x64xi1> to vector<64x64xi32>
    %18 = arith.sitofp %17 : vector<64x64xi32> to vector<64x64xf32>
    %c0_1 = arith.constant 0 : index
    %c0_2 = arith.constant 0 : index
    %19 = vector.load %arg2[%c0_1, %c0_2] : memref<64x256xf32, #tpu.memory_space<vmem>>, vector<64x256xf32>
    %cst = arith.constant dense<0.000000e+00> : vector<64x256xf32>
    %20 = tpu.matmul %18, %19, %cst {dimension_numbers = #tpu.dot_dimension_numbers<[1], [0], [0], [1], [0, 0, 1, 1], [], []>} : vector<64x64xf32>, vector<64x256xf32>, vector<64x256xf32> -> vector<64x256xf32>
    %c0_3 = arith.constant 0 : index
    %c0_4 = arith.constant 0 : index
    %21 = vector.load %arg3[%c0_3, %c0_4] : memref<64x256xf32, #tpu.memory_space<vmem>>, vector<64x256xf32>
    tpu.vector_store %arg3[%c0_3, %c0_4], %20 {strides = array<i32>} : memref<64x256xf32, #tpu.memory_space<vmem>>, vector<64x256xf32>,
    return
  }
  func.func @transform_0(%arg0: i32) -> (i32, i32) {
    %c0_i32 = arith.constant 0 : i32
    %c0_i32_0 = arith.constant 0 : i32
    return %arg0, %c0_i32 : i32, i32
  }
  func.func @transform_1(%arg0: i32) -> (i32, i32) {
    %c0_i32 = arith.constant 0 : i32
    %c0_i32_0 = arith.constant 0 : i32
    %c0_i32_1 = arith.constant 0 : i32
    return %c0_i32, %c0_i32_0 : i32, i32
  }
  func.func @transform_2(%arg0: i32) -> (i32, i32) {
    %c0_i32 = arith.constant 0 : i32
    %c0_i32_0 = arith.constant 0 : i32
    return %arg0, %c0_i32 : i32, i32
  }
}

</mosaic_0001>

<llo_original>
// kernel: tpu_custom_call.1
$region0: #{tpu_custom_call.1}
  #allocation0 [shape = 'u32[]', space=smem, size = 0x4, offset = 0x4, fixed_abs, tag = 'smem constant byte address 0x4 - core index']
  #allocation1 [shape = 'u32[144,128]{1,0:T(1,128)}', space=vmem, size = 0x12000, scoped, tag = 'internal scratch']
  %s0 = inlined_call_operand.vmem [shape: s32[64,4], index: 0, kind: input, shape index: {}]
  %s1 = inlined_call_operand.hbm [shape: f32[64,256], index: 1, kind: input, shape index: {}]
  %s2 = inlined_call_operand.hbm [shape: f32[64,256], index: 2, kind: output, shape index: {}]
  %s3 = sld [smem:[#allocation0]]
  $region22: #{tpu_custom_call.1} parent=0
    _
  %s5 = ssub.s32 1, %s3
  %s6 = scalar_select 0, %s5, %s3
  $region1: #{tpu_custom_call.1} parent=0
    #allocation2 [shape = 'u8[65536]{0}', space=vmem, size = 0x10000, scoped, tag = 'input window, operand 1, single buffered']
    #allocation3 [shape = 's32[1]{0}', space=sflag, size = 0x4, scoped, tag = 'scoped memory for tpu_custom_call.1']
    #allocation4 [shape = 's32[1]{0}', space=sflag, size = 0x4, scoped, tag = 'scoped memory for tpu_custom_call.1']
    #allocation5 [shape = 'u8[65536]{0}', space=vmem, size = 0x10000, scoped, tag = 'output window, operand 0, single buffered']
    %7 = vsyncpa [#allocation3], 0
    %8 = vsyncpa [#allocation4], 0
    // Predicated region
    $region2: #{tpu_custom_call.1} parent=1 // pred_check
      _
    $region3: #{tpu_custom_call.1} parent=1 // pred_check_branch
      %10 = sbr.rel (0) target = $region5
    $region4: #{tpu_custom_call.1} parent=1 // pred_region
      _
    $region5: #{tpu_custom_call.1} parent=1 // pred_fallthru
      _
    // Predicated region
    $region6: #{tpu_custom_call.1} parent=1 // pred_check
      _
    $region7: #{tpu_custom_call.1} parent=1 // pred_check_branch
      %12 = sbr.rel (0) target = $region9
    $region8: #{tpu_custom_call.1} parent=1 // pred_region
      %s14 = ssub.s32 2048, 2048
      %15 = vsyncadd [#allocation3], %s14
      %s16 = sshll.u32 [#allocation2], 4
      %s17 = int_to_ptr.vmem [resolvable:$true] %s16
      %22 = dma.hbm_to_vmem [thread:$0]  %s1, 2048, %s17, [#allocation3], 256, 256, 16
    $region9: #{tpu_custom_call.1} parent=1 // pred_fallthru
      _
    // Predicated region
    $region10: #{tpu_custom_call.1} parent=1 // pred_check
      _
    $region11: #{tpu_custom_call.1} parent=1 // pred_check_branch
      %24 = sbr.rel (0) target = $region13
    $region12: #{tpu_custom_call.1} parent=1 // pred_region
      %25 = dma.done [#allocation3], 2048
    $region13: #{tpu_custom_call.1} parent=1 // pred_fallthru
      _
    %v26 = vld [vmem:[%s0] sm:$0xff]
    %v27 = vld [vmem:[%s0 + $0x8] sm:$0xff]
    %v28 = vld [vmem:[%s0 + $0x10] sm:$0xff]
    %v29 = vld [vmem:[%s0 + $0x18] sm:$0xff]
    %v30 = vld [vmem:[%s0 + $0x20] sm:$0xff]
    %v31 = vld [vmem:[%s0 + $0x28] sm:$0xff]
    %v32 = vld [vmem:[%s0 + $0x30] sm:$0xff]
    %v33 = vld [vmem:[%s0 + $0x38] sm:$0xff]
    %v34 = vlaneseq
    %v35 = vand.u32 %v34, 127
    %36 = vset.pattern.permute.xlu0 0
    %37 = vperm.xlu0 %36, %v26
    %v38 = vpop.permute.xlu0 %37
    %39 = vset.pattern.permute.xlu0 0
    %40 = vperm.xlu0 %39, %v27
    %v41 = vpop.permute.xlu0 %40
    %42 = vset.pattern.permute.xlu0 0
    %43 = vperm.xlu0 %42, %v28
    %v44 = vpop.permute.xlu0 %43
    %45 = vset.pattern.permute.xlu0 0
    %46 = vperm.xlu0 %45, %v29
    %v47 = vpop.permute.xlu0 %46
    %48 = vset.pattern.permute.xlu0 0
    %49 = vperm.xlu0 %48, %v30
    %v50 = vpop.permute.xlu0 %49
    %51 = vset.pattern.permute.xlu0 0
    %52 = vperm.xlu0 %51, %v31
    %v53 = vpop.permute.xlu0 %52
    %54 = vset.pattern.permute.xlu0 0
    %55 = vperm.xlu0 %54, %v32
    %v56 = vpop.permute.xlu0 %55
    %57 = vset.pattern.permute.xlu0 0
    %58 = vperm.xlu0 %57, %v33
    %v59 = vpop.permute.xlu0 %58
    %vm60 = vcmp.eq.s32.totalorder %v35, %v38
    %vm61 = vcmp.eq.s32.totalorder %v35, %v41
    %vm62 = vcmp.eq.s32.totalorder %v35, %v44
    %vm63 = vcmp.eq.s32.totalorder %v35, %v47
    %vm64 = vcmp.eq.s32.totalorder %v35, %v50
    %vm65 = vcmp.eq.s32.totalorder %v35, %v53
    %vm66 = vcmp.eq.s32.totalorder %v35, %v56
    %vm67 = vcmp.eq.s32.totalorder %v35, %v59
    %68 = vset.pattern.permute.xlu0 1
    %69 = vperm.xlu0 %68, %v26
    %v70 = vpop.permute.xlu0 %69
    %71 = vset.pattern.permute.xlu0 1
    %72 = vperm.xlu0 %71, %v27
    %v73 = vpop.permute.xlu0 %72
    %74 = vset.pattern.permute.xlu0 1
    %75 = vperm.xlu0 %74, %v28
    %v76 = vpop.permute.xlu0 %75
    %77 = vset.pattern.permute.xlu0 1
    %78 = vperm.xlu0 %77, %v29
    %v79 = vpop.permute.xlu0 %78
    %80 = vset.pattern.permute.xlu0 1
    %81 = vperm.xlu0 %80, %v30
    %v82 = vpop.permute.xlu0 %81
    %83 = vset.pattern.permute.xlu0 1
    %84 = vperm.xlu0 %83, %v31
    %v85 = vpop.permute.xlu0 %84
    %86 = vset.pattern.permute.xlu0 1
    %87 = vperm.xlu0 %86, %v32
    %v88 = vpop.permute.xlu0 %87
    %89 = vset.pattern.permute.xlu0 1
    %90 = vperm.xlu0 %89, %v33
    %v91 = vpop.permute.xlu0 %90
    %vm92 = vcmp.eq.s32.totalorder %v35, %v70
    %vm93 = vcmp.eq.s32.totalorder %v35, %v73
    %vm94 = vcmp.eq.s32.totalorder %v35, %v76
    %vm95 = vcmp.eq.s32.totalorder %v35, %v79
    %vm96 = vcmp.eq.s32.totalorder %v35, %v82
    %vm97 = vcmp.eq.s32.totalorder %v35, %v85
    %vm98 = vcmp.eq.s32.totalorder %v35, %v88
    %vm99 = vcmp.eq.s32.totalorder %v35, %v91
    %vm100 = vmor %vm60, %vm92
    %vm101 = vmor %vm61, %vm93
    %vm102 = vmor %vm62, %vm94
    %vm103 = vmor %vm63, %vm95
    %vm104 = vmor %vm64, %vm96
    %vm105 = vmor %vm65, %vm97
    %vm106 = vmor %vm66, %vm98
    %vm107 = vmor %vm67, %vm99
    %108 = vset.pattern.permute.xlu0 2
    %109 = vperm.xlu0 %108, %v26
    %v110 = vpop.permute.xlu0 %109
    %111 = vset.pattern.permute.xlu0 2
    %112 = vperm.xlu0 %111, %v27
    %v113 = vpop.permute.xlu0 %112
    %114 = vset.pattern.permute.xlu0 2
    %115 = vperm.xlu0 %114, %v28
    %v116 = vpop.permute.xlu0 %115
    %117 = vset.pattern.permute.xlu0 2
    %118 = vperm.xlu0 %117, %v29
    %v119 = vpop.permute.xlu0 %118
    %120 = vset.pattern.permute.xlu0 2
    %121 = vperm.xlu0 %120, %v30
    %v122 = vpop.permute.xlu0 %121
    %123 = vset.pattern.permute.xlu0 2
    %124 = vperm.xlu0 %123, %v31
    %v125 = vpop.permute.xlu0 %124
    %126 = vset.pattern.permute.xlu0 2
    %127 = vperm.xlu0 %126, %v32
    %v128 = vpop.permute.xlu0 %127
    %129 = vset.pattern.permute.xlu0 2
    %130 = vperm.xlu0 %129, %v33
    %v131 = vpop.permute.xlu0 %130
    %vm132 = vcmp.eq.s32.totalorder %v35, %v110
    %vm133 = vcmp.eq.s32.totalorder %v35, %v113
    %vm134 = vcmp.eq.s32.totalorder %v35, %v116
    %vm135 = vcmp.eq.s32.totalorder %v35, %v119
    %vm136 = vcmp.eq.s32.totalorder %v35, %v122
    %vm137 = vcmp.eq.s32.totalorder %v35, %v125
    %vm138 = vcmp.eq.s32.totalorder %v35, %v128
    %vm139 = vcmp.eq.s32.totalorder %v35, %v131
    %vm140 = vmor %vm100, %vm132
    %vm141 = vmor %vm101, %vm133
    %vm142 = vmor %vm102, %vm134
    %vm143 = vmor %vm103, %vm135
    %vm144 = vmor %vm104, %vm136
    %vm145 = vmor %vm105, %vm137
    %vm146 = vmor %vm106, %vm138
    %vm147 = vmor %vm107, %vm139
    %148 = vset.pattern.permute.xlu0 3
    %149 = vperm.xlu0 %148, %v26
    %v150 = vpop.permute.xlu0 %149
    %151 = vset.pattern.permute.xlu0 3
    %152 = vperm.xlu0 %151, %v27
    %v153 = vpop.permute.xlu0 %152
    %154 = vset.pattern.permute.xlu0 3
    %155 = vperm.xlu0 %154, %v28
    %v156 = vpop.permute.xlu0 %155
    %157 = vset.pattern.permute.xlu0 3
    %158 = vperm.xlu0 %157, %v29
    %v159 = vpop.permute.xlu0 %158
    %160 = vset.pattern.permute.xlu0 3
    %161 = vperm.xlu0 %160, %v30
    %v162 = vpop.permute.xlu0 %161
    %163 = vset.pattern.permute.xlu0 3
    %164 = vperm.xlu0 %163, %v31
    %v165 = vpop.permute.xlu0 %164
    %166 = vset.pattern.permute.xlu0 3
    %167 = vperm.xlu0 %166, %v32
    %v168 = vpop.permute.xlu0 %167
    %169 = vset.pattern.permute.xlu0 3
    %170 = vperm.xlu0 %169, %v33
    %v171 = vpop.permute.xlu0 %170
    %vm172 = vcmp.eq.s32.totalorder %v35, %v150
    %vm173 = vcmp.eq.s32.totalorder %v35, %v153
    %vm174 = vcmp.eq.s32.totalorder %v35, %v156
    %vm175 = vcmp.eq.s32.totalorder %v35, %v159
    %vm176 = vcmp.eq.s32.totalorder %v35, %v162
    %vm177 = vcmp.eq.s32.totalorder %v35, %v165
    %vm178 = vcmp.eq.s32.totalorder %v35, %v168
    %vm179 = vcmp.eq.s32.totalorder %v35, %v171
    %vm180 = vmor %vm140, %vm172
    %vm181 = vmor %vm141, %vm173
    %vm182 = vmor %vm142, %vm174
    %vm183 = vmor %vm143, %vm175
    %vm184 = vmor %vm144, %vm176
    %vm185 = vmor %vm145, %vm177
    %vm186 = vmor %vm146, %vm178
    %vm187 = vmor %vm147, %vm179
    %v188 = vsel %vm180, 1, 0
    %v189 = vsel %vm181, 1, 0
    %v190 = vsel %vm182, 1, 0
    %v191 = vsel %vm183, 1, 0
    %v192 = vsel %vm184, 1, 0
    %v193 = vsel %vm185, 1, 0
    %v194 = vsel %vm186, 1, 0
    %v195 = vsel %vm187, 1, 0
    %v196 = vcvt.s32.f32 %v188
    %v197 = vcvt.s32.f32 %v189
    %v198 = vcvt.s32.f32 %v190
    %v199 = vcvt.s32.f32 %v191
    %v200 = vcvt.s32.f32 %v192
    %v201 = vcvt.s32.f32 %v193
    %v202 = vcvt.s32.f32 %v194
    %v203 = vcvt.s32.f32 %v195
    %v204 = vld [vmem:[#allocation2] sm:$0xff]
    %v205 = vld [vmem:[#allocation2 + $0x8] sm:$0xff]
    %v206 = vld [vmem:[#allocation2 + $0x10] sm:$0xff]
    %v207 = vld [vmem:[#allocation2 + $0x18] sm:$0xff]
    %v208 = vld [vmem:[#allocation2 + $0x20] sm:$0xff]
    %v209 = vld [vmem:[#allocation2 + $0x28] sm:$0xff]
    %v210 = vld [vmem:[#allocation2 + $0x30] sm:$0xff]
    %v211 = vld [vmem:[#allocation2 + $0x38] sm:$0xff]
    %v212 = vld [vmem:[#allocation2 + $0x40] sm:$0xff]
    %v213 = vld [vmem:[#allocation2 + $0x48] sm:$0xff]
    %v214 = vld [vmem:[#allocation2 + $0x50] sm:$0xff]
    %v215 = vld [vmem:[#allocation2 + $0x58] sm:$0xff]
    %v216 = vld [vmem:[#allocation2 + $0x60] sm:$0xff]
    %v217 = vld [vmem:[#allocation2 + $0x68] sm:$0xff]
    %v218 = vld [vmem:[#allocation2 + $0x70] sm:$0xff]
    %v219 = vld [vmem:[#allocation2 + $0x78] sm:$0xff]
    %vm220 = vcmask 523264
    %v222 = vsel %vm220, %v196, 0
    %v225 = vsel %vm220, %v197, 0
    %v228 = vsel %vm220, %v198, 0
    %v231 = vsel %vm220, %v199, 0
    %v234 = vsel %vm220, %v200, 0
    %v237 = vsel %vm220, %v201, 0
    %v240 = vsel %vm220, %v202, 0
    %v243 = vsel %vm220, %v203, 0
    %245 = vmatprep.subr.mxu0 %v205
    %246 = vmatpush1.msra.mxu0 %v204
    %247 = vmatprep.subr.mxu0 %v207
    %248 = vmatpush1.msra.mxu0 %v206
    %249 = vmatprep.subr.mxu0 %v209
    %250 = vmatpush1.msra.mxu0 %v208
    %251 = vmatprep.subr.mxu0 %v211
    %252 = vmatpush1.msra.mxu0 %v210
    %253 = vmatprep.subr.mxu0 %v213
    %254 = vmatpush1.msra.mxu0 %v212
    %255 = vmatprep.subr.mxu0 %v215
    %256 = vmatpush1.msra.mxu0 %v214
    %257 = vmatprep.subr.mxu0 %v217
    %258 = vmatpush1.msra.mxu0 %v216
    %259 = vmatprep.subr.mxu0 %v219
    %260 = vmatpush1.msra.mxu0 %v218
    %261 = vmatprep.subr.mxu0 0.0
    %262 = vmatpush1.msra.mxu0 0.0
    %263 = vmatprep.subr.mxu0 0.0
    %264 = vmatpush1.msra.mxu0 0.0
    %265 = vmatprep.subr.mxu0 0.0
    %266 = vmatpush1.msra.mxu0 0.0
    %267 = vmatprep.subr.mxu0 0.0
    %268 = vmatpush1.msra.mxu0 0.0
    %269 = vmatprep.subr.mxu0 0.0
    %270 = vmatpush1.msra.mxu0 0.0
    %271 = vmatprep.subr.mxu0 0.0
    %272 = vmatpush1.msra.mxu0 0.0
    %273 = vmatprep.subr.mxu0 0.0
    %274 = vmatpush1.msra.mxu0 0.0
    %275 = vmatprep.subr.mxu0 0.0
    %276 = vmatpush1.msra.mxu0 0.0
    %277 = vmatprep.subr.mxu0 0.0
    %278 = vmatpush1.msra.mxu0 0.0
    %279 = vmatprep.subr.mxu0 0.0
    %280 = vmatpush1.msra.mxu0 0.0
    %281 = vmatprep.subr.mxu0 0.0
    %282 = vmatpush1.msra.mxu0 0.0
    %283 = vmatprep.subr.mxu0 0.0
    %284 = vmatpush1.msra.mxu0 0.0
    %285 = vmatprep.subr.mxu0 0.0
    %286 = vmatpush1.msra.mxu0 0.0
    %287 = vmatprep.subr.mxu0 0.0
    %288 = vmatpush1.msra.mxu0 0.0
    %289 = vmatprep.subr.mxu0 0.0
    %290 = vmatpush1.msra.mxu0 0.0
    %291 = vmatprep.subr.mxu0 0.0
    %292 = vmatpush1.msra.mxu0 0.0
    %293 = vmatprep.subr.mxu0 0.0
    %294 = vmatpush1.msra.mxu0 0.0
    %295 = vmatprep.subr.mxu0 0.0
    %296 = vmatpush1.msra.mxu0 0.0
    %297 = vmatprep.subr.mxu0 0.0
    %298 = vmatpush1.msra.mxu0 0.0
    %299 = vmatprep.subr.mxu0 0.0
    %300 = vmatpush1.msra.mxu0 0.0
    %301 = vmatprep.subr.mxu0 0.0
    %302 = vmatpush1.msra.mxu0 0.0
    %303 = vmatprep.subr.mxu0 0.0
    %304 = vmatpush1.msra.mxu0 0.0
    %305 = vmatprep.subr.mxu0 0.0
    %306 = vmatpush1.msra.mxu0 0.0
    %307 = vmatprep.subr.mxu0 0.0
    %308 = vmatpush1.msra.mxu0 0.0
    %309 = vmatprep.mubr.f32.mxu0 0.0
    %310 = vmatmul.mubr.f32.gmra.mrb[0].mxu0 %v222
    %v311 = vpop.f32.mrb[0].mxu0
    %v312 = vadd.f32 0.0, %v311
    %v313 = vpop.f32.mrb[0].mxu0
    %v314 = vadd.f32 0.0, %v313
    %315 = vmatprep.mubr.f32.mxu0 0.0
    %316 = vmatmul.mubr.f32.gmra.mrb[0].mxu0 %v225
    %v317 = vpop.f32.mrb[0].mxu0
    %v318 = vadd.f32 0.0, %v317
    %v319 = vpop.f32.mrb[0].mxu0
    %v320 = vadd.f32 0.0, %v319
    %321 = vmatprep.mubr.f32.mxu0 0.0
    %322 = vmatmul.mubr.f32.gmra.mrb[0].mxu0 %v228
    %v323 = vpop.f32.mrb[0].mxu0
    %v324 = vadd.f32 0.0, %v323
    %v325 = vpop.f32.mrb[0].mxu0
    %v326 = vadd.f32 0.0, %v325
    %327 = vmatprep.mubr.f32.mxu0 0.0
    %328 = vmatmul.mubr.f32.gmra.mrb[0].mxu0 %v231
    %v329 = vpop.f32.mrb[0].mxu0
    %v330 = vadd.f32 0.0, %v329
    %v331 = vpop.f32.mrb[0].mxu0
    %v332 = vadd.f32 0.0, %v331
    %333 = vmatprep.mubr.f32.mxu0 0.0
    %334 = vmatmul.mubr.f32.gmra.mrb[0].mxu0 %v234
    %v335 = vpop.f32.mrb[0].mxu0
    %v336 = vadd.f32 0.0, %v335
    %v337 = vpop.f32.mrb[0].mxu0
    %v338 = vadd.f32 0.0, %v337
    %339 = vmatprep.mubr.f32.mxu0 0.0
    %340 = vmatmul.mubr.f32.gmra.mrb[0].mxu0 %v237
    %v341 = vpop.f32.mrb[0].mxu0
    %v342 = vadd.f32 0.0, %v341
    %v343 = vpop.f32.mrb[0].mxu0
    %v344 = vadd.f32 0.0, %v343
    %345 = vmatprep.mubr.f32.mxu0 0.0
    %346 = vmatmul.mubr.f32.gmra.mrb[0].mxu0 %v240
    %v347 = vpop.f32.mrb[0].mxu0
    %v348 = vadd.f32 0.0, %v347
    %v349 = vpop.f32.mrb[0].mxu0
    %v350 = vadd.f32 0.0, %v349
    %351 = vmatprep.mubr.f32.mxu0 0.0
    %352 = vmatmul.mubr.f32.gmra.mrb[0].mxu0 %v243
    %v353 = vpop.f32.mrb[0].mxu0
    %v354 = vadd.f32 0.0, %v353
    %v355 = vpop.f32.mrb[0].mxu0
    %v356 = vadd.f32 0.0, %v355
    %357 = vdwg.mxu0
    %358 = vst [vmem:[#allocation5] sm:$0xff] %v312
    %359 = vst [vmem:[#allocation5 + $0x8] sm:$0xff] %v314
    %360 = vst [vmem:[#allocation5 + $0x10] sm:$0xff] %v318
    %361 = vst [vmem:[#allocation5 + $0x18] sm:$0xff] %v320
    %362 = vst [vmem:[#allocation5 + $0x20] sm:$0xff] %v324
    %363 = vst [vmem:[#allocation5 + $0x28] sm:$0xff] %v326
    %364 = vst [vmem:[#allocation5 + $0x30] sm:$0xff] %v330
    %365 = vst [vmem:[#allocation5 + $0x38] sm:$0xff] %v332
    %366 = vst [vmem:[#allocation5 + $0x40] sm:$0xff] %v336
    %367 = vst [vmem:[#allocation5 + $0x48] sm:$0xff] %v338
    %368 = vst [vmem:[#allocation5 + $0x50] sm:$0xff] %v342
    %369 = vst [vmem:[#allocation5 + $0x58] sm:$0xff] %v344
    %370 = vst [vmem:[#allocation5 + $0x60] sm:$0xff] %v348
    %371 = vst [vmem:[#allocation5 + $0x68] sm:$0xff] %v350
    %372 = vst [vmem:[#allocation5 + $0x70] sm:$0xff] %v354
    %373 = vst [vmem:[#allocation5 + $0x78] sm:$0xff] %v356
    // Predicated region
    $region14: #{tpu_custom_call.1} parent=1 // pred_check
      _
    $region15: #{tpu_custom_call.1} parent=1 // pred_check_branch
      %375 = sbr.rel (0) target = $region17
    $region16: #{tpu_custom_call.1} parent=1 // pred_region
      %s377 = ssub.s32 2048, 2048
      %378 = vsyncadd [#allocation4], %s377
      %s379 = sshll.u32 [#allocation5], 4
      %s380 = int_to_ptr.vmem [resolvable:$true] %s379
      %385 = dma.vmem_to_hbm [thread:$0]  %s380, 2048, %s2, [#allocation4], 256, 256, 16
    $region17: #{tpu_custom_call.1} parent=1 // pred_fallthru
      _
    // Predicated region
    $region18: #{tpu_custom_call.1} parent=1 // pred_check
      _
    $region19: #{tpu_custom_call.1} parent=1 // pred_check_branch
      %387 = sbr.rel (0) target = $region21
    $region20: #{tpu_custom_call.1} parent=1 // pred_region
      %388 = dma.done [#allocation4], 2048
    $region21: #{tpu_custom_call.1} parent=1 // pred_fallthru
      _
    %389 = vsyncpa [#allocation3], 1
    %390 = vsyncpa [#allocation4], 1

</llo_original>
